<compile_context>
chip_gen: v7x
topology: tpu7x:2x2x1
jax: 0.10.0
libtpu: 0.0.40
codegen_flags: <defaults>
</compile_context>

<pallas_src>
import functools

import jax
import jax.numpy as jnp
from jax.experimental import pallas as pl
from jax.experimental.pallas import tpu as pltpu


def _round_up(x, m):
    return ((x + m - 1) // m) * m


def _generator_kernel(depth, compute_dtype,
                      z_ref, w_in_ref, b_in_ref,
                      wh_ref, bh_ref,
                      w_out_ref, b_out_ref,
                      out_ref):
    """Fused MLP forward for one batch tile.

    z_ref    : (TB, z_dim)            compute_dtype
    w_in_ref : (z_dim, width)         compute_dtype
    b_in_ref : (1, width)             f32
    wh_ref   : (depth, width, width)  compute_dtype
    bh_ref   : (depth, 1, width)      f32
    w_out_ref: (width, Fp)            compute_dtype   (Fp = features padded to 128)
    b_out_ref: (1, Fp)                f32
    out_ref  : (TB, Fp)               f32 (lane-dense store; wrapper slices)
    """
    # Input layer + ReLU (MXU matmul, f32 accumulate; elementwise stays f32).
    x = jnp.dot(z_ref[...], w_in_ref[...], preferred_element_type=jnp.float32)
    x = jnp.maximum(x + b_in_ref[...], 0.0)

    # Hidden layers + ReLU (depth is a static Python int -> unrolled).
    for i in range(depth):
        h = jnp.dot(x.astype(compute_dtype), wh_ref[i],
                    preferred_element_type=jnp.float32)
        x = jnp.maximum(h + bh_ref[i], 0.0)

    # Output layer + tanh, lane-dense (128-padded) store.
    o = jnp.dot(x.astype(compute_dtype), w_out_ref[...],
                preferred_element_type=jnp.float32)
    out_ref[...] = jnp.tanh(o + b_out_ref[...])


def generator_forward(z, params, *, depth, batch_tile=256,
                      compute_dtype=jnp.bfloat16):
    """Run the fused Generator kernel. z: (B, z_dim) float32 -> (B, num_features) f32."""
    w_in, b_in, wh, bh, w_out, b_out = params
    B, z_dim = z.shape
    width = w_in.shape[1]
    num_features = w_out.shape[1]

    # Batch tiling: largest tile <= batch_tile (multiple of 8); pad the batch
    # up to a multiple of it so ragged / small batches still work.
    tb = max(8, min(_round_up(batch_tile, 8), _round_up(B, 8)))
    Bp = _round_up(B, tb)

    # Lane-dense output: pad the feature axis to a multiple of 128 so every
    # output store is a full (unmasked) vst. Zero weight/bias columns keep the
    # math identical; the wrapper slices the pad away.
    Fp = _round_up(num_features, 128)

    zp = z if Bp == B else jnp.pad(z, ((0, Bp - B), (0, 0)))
    zp = zp.astype(compute_dtype)

    w_in_c = w_in.astype(compute_dtype)
    wh_c = wh.astype(compute_dtype)
    w_out_c = jnp.pad(w_out, ((0, 0), (0, Fp - num_features))).astype(compute_dtype)
    b_in_c = b_in.astype(jnp.float32)
    bh_c = bh.astype(jnp.float32)
    b_out_c = jnp.pad(b_out, ((0, 0), (0, Fp - num_features))).astype(jnp.float32)

    kernel = functools.partial(_generator_kernel, depth, compute_dtype)
    grid = (Bp // tb,)

    out = pl.pallas_call(
        kernel,
        out_shape=jax.ShapeDtypeStruct((Bp, Fp), jnp.float32),
        grid_spec=pltpu.PrefetchScalarGridSpec(
            num_scalar_prefetch=0,
            grid=grid,
            in_specs=[
                # activations: tiled over batch (only streamed tensor besides out)
                # NOTE: if the z DMA ever shows up exposed at very large width,
                # pipeline_mode=pl.Buffered(3) here is cheap insurance.
                pl.BlockSpec((tb, z_dim), lambda i: (i, 0)),
                # weights / biases: grid-invariant, resident across batch tiles
                pl.BlockSpec((z_dim, width), lambda i: (0, 0)),
                pl.BlockSpec((1, width), lambda i: (0, 0)),
                pl.BlockSpec((depth, width, width), lambda i: (0, 0, 0)),
                pl.BlockSpec((depth, 1, width), lambda i: (0, 0, 0)),
                pl.BlockSpec((width, Fp), lambda i: (0, 0)),
                pl.BlockSpec((1, Fp), lambda i: (0, 0)),
            ],
            out_specs=pl.BlockSpec((tb, Fp), lambda i: (i, 0)),
        ),
        compiler_params=pltpu.CompilerParams(
            dimension_semantics=("parallel",),      # batch tiles shard across TCs (v7x)
            vmem_limit_bytes=48 * 1024 * 1024,      # > default scoped, < v7x physical
        ),
    )(zp, w_in_c, b_in_c, wh_c, bh_c, w_out_c, b_out_c)

    return out[:B, :num_features]


def init_params(key, z_dim, num_features, depth, width):
    """Deterministic synthetic parameters (shapes match the nn.Module __init__).

    PyTorch nn.Linear stores weight as (out, in); we keep them pre-transposed
    as (in, out) so the kernel computes x @ W + b with identical semantics.
    Biases are stored with a broadcastable leading dim to avoid in-kernel
    broadcast_in_dim churn.
    """
    ks = jax.random.split(key, 6)
    scale = 0.1
    w_in = scale * jax.random.normal(ks[0], (z_dim, width), jnp.float32)
    b_in = scale * jax.random.normal(ks[1], (1, width), jnp.float32)
    wh = scale * jax.random.normal(ks[2], (depth, width, width), jnp.float32)
    bh = scale * jax.random.normal(ks[3], (depth, 1, width), jnp.float32)
    w_out = scale * jax.random.normal(ks[4], (width, num_features), jnp.float32)
    b_out = scale * jax.random.normal(ks[5], (1, num_features), jnp.float32)
    return (w_in, b_in, wh, bh, w_out, b_out)


def generator_ref(z, params, *, depth):
    """Pure-JAX f32 reference of the PyTorch forward."""
    w_in, b_in, wh, bh, w_out, b_out = params
    x = jax.nn.relu(z @ w_in + b_in)
    for i in range(depth):
        x = jax.nn.relu(x @ wh[i] + bh[i])
    return jnp.tanh(x @ w_out + b_out)


if __name__ == "__main__":
    # Small shapes consistent with Generator(z_dim, num_features, depth, width)
    z_dim = 16
    num_features = 8
    depth = 3
    width = 32

    key = jax.random.PRNGKey(0)
    k_params, k_z1, k_z2 = jax.random.split(key, 3)
    params = init_params(k_params, z_dim, num_features, depth, width)

    # --- check 1: small batch, pure f32 compute path (exact vs reference) ---
    z_small = jax.random.normal(k_z1, (8, z_dim), jnp.float32)
    out_f32 = generator_forward(z_small, params, depth=depth,
                                compute_dtype=jnp.float32)
    out_f32 = jax.block_until_ready(out_f32)
    ref_small = generator_ref(z_small, params, depth=depth)
    assert out_f32.shape == (8, num_features)
    assert jnp.allclose(out_f32, ref_small, atol=1e-5, rtol=1e-5), \
        "f32 path mismatch vs reference"

    # --- check 2: ragged batch + large batch tile + bf16 MXU path ---
    z_big = jax.random.normal(k_z2, (300, z_dim), jnp.float32)
    out_bf16 = generator_forward(z_big, params, depth=depth,
                                 batch_tile=256, compute_dtype=jnp.bfloat16)
    out_bf16 = jax.block_until_ready(out_bf16)
    ref_big = generator_ref(z_big, params, depth=depth)
    assert out_bf16.shape == (300, num_features)
    assert jnp.allclose(out_bf16, ref_big, atol=2e-2, rtol=2e-2), \
        "bf16 path mismatch vs reference"

    print("KERNEL_OK")
</pallas_src>

<mosaic_0001>
module attributes {stable_mosaic.version = 11 : i64} {
  func.func @_generator_kernel(%arg0: i32, %arg1: memref<8x16xf32, #tpu.memory_space<vmem>>, %arg2: memref<16x32xf32, #tpu.memory_space<vmem>>, %arg3: memref<1x32xf32, #tpu.memory_space<vmem>>, %arg4: memref<3x32x32xf32, #tpu.memory_space<vmem>>, %arg5: memref<3x1x32xf32, #tpu.memory_space<vmem>>, %arg6: memref<32x128xf32, #tpu.memory_space<vmem>>, %arg7: memref<1x128xf32, #tpu.memory_space<vmem>>, %arg8: memref<8x128xf32, #tpu.memory_space<vmem>>) attributes {dimension_semantics = [#tpu.dimension_semantics<parallel>], iteration_bounds = array<i64: 1>, scalar_prefetch = 0 : i64, scratch_operands = 0 : i64, tpu.core_type = #tpu.core_type<tc>, window_params = [{transform_indices = @transform_0, window_bounds = array<i64: 8, 16>}, {pipeline_mode = #tpu.pipeline_mode<synchronous>, transform_indices = @transform_1, window_bounds = array<i64: 16, 32>}, {pipeline_mode = #tpu.pipeline_mode<synchronous>, transform_indices = @transform_2, window_bounds = array<i64: 1, 32>}, {pipeline_mode = #tpu.pipeline_mode<synchronous>, transform_indices = @transform_3, window_bounds = array<i64: 3, 32, 32>}, {pipeline_mode = #tpu.pipeline_mode<synchronous>, transform_indices = @transform_4, window_bounds = array<i64: 3, 1, 32>}, {pipeline_mode = #tpu.pipeline_mode<synchronous>, transform_indices = @transform_5, window_bounds = array<i64: 32, 128>}, {pipeline_mode = #tpu.pipeline_mode<synchronous>, transform_indices = @transform_6, window_bounds = array<i64: 1, 128>}, {transform_indices = @transform_7, window_bounds = array<i64: 8, 128>}]} {
    %c0 = arith.constant 0 : index
    %c0_0 = arith.constant 0 : index
    %0 = vector.load %arg1[%c0, %c0_0] : memref<8x16xf32, #tpu.memory_space<vmem>>, vector<8x16xf32>
    %c0_1 = arith.constant 0 : index
    %c0_2 = arith.constant 0 : index
    %1 = vector.load %arg2[%c0_1, %c0_2] : memref<16x32xf32, #tpu.memory_space<vmem>>, vector<16x32xf32>
    %cst = arith.constant dense<0.000000e+00> : vector<8x32xf32>
    %2 = tpu.matmul %0, %1, %cst {dimension_numbers = #tpu.dot_dimension_numbers<[1], [0], [0], [1], [0, 0, 1, 1], [], []>} : vector<8x16xf32>, vector<16x32xf32>, vector<8x32xf32> -> vector<8x32xf32>
    %c0_3 = arith.constant 0 : index
    %c0_4 = arith.constant 0 : index
    %3 = vector.load %arg3[%c0_3, %c0_4] : memref<1x32xf32, #tpu.memory_space<vmem>>, vector<1x32xf32>
    %4 = vector.broadcast %3 : vector<1x32xf32> to vector<8x32xf32>
    %5 = arith.addf %2, %4 : vector<8x32xf32>
    %cst_5 = arith.constant 0.000000e+00 : f32
    %6 = vector.broadcast %cst_5 : f32 to vector<8x32xf32>
    %7 = arith.maximumf %5, %6 : vector<8x32xf32>
    %c0_6 = arith.constant 0 : index
    %c0_7 = arith.constant 0 : index
    %c0_8 = arith.constant 0 : index
    %8 = vector.load %arg4[%c0_6, %c0_7, %c0_8] : memref<3x32x32xf32, #tpu.memory_space<vmem>>, vector<1x32x32xf32>
    %9 = vector.shape_cast %8 : vector<1x32x32xf32> to vector<32x32xf32>
    %cst_9 = arith.constant dense<0.000000e+00> : vector<8x32xf32>
    %10 = tpu.matmul %7, %9, %cst_9 {dimension_numbers = #tpu.dot_dimension_numbers<[1], [0], [0], [1], [0, 0, 1, 1], [], []>} : vector<8x32xf32>, vector<32x32xf32>, vector<8x32xf32> -> vector<8x32xf32>
    %c0_10 = arith.constant 0 : index
    %c0_11 = arith.constant 0 : index
    %c0_12 = arith.constant 0 : index
    %11 = vector.load %arg5[%c0_10, %c0_11, %c0_12] : memref<3x1x32xf32, #tpu.memory_space<vmem>>, vector<1x1x32xf32>
    %12 = vector.shape_cast %11 : vector<1x1x32xf32> to vector<1x32xf32>
    %13 = vector.broadcast %12 : vector<1x32xf32> to vector<8x32xf32>
    %14 = arith.addf %10, %13 : vector<8x32xf32>
    %cst_13 = arith.constant 0.000000e+00 : f32
    %15 = vector.broadcast %cst_13 : f32 to vector<8x32xf32>
    %16 = arith.maximumf %14, %15 : vector<8x32xf32>
    %c1 = arith.constant 1 : index
    %c0_14 = arith.constant 0 : index
    %c0_15 = arith.constant 0 : index
    %17 = vector.load %arg4[%c1, %c0_14, %c0_15] : memref<3x32x32xf32, #tpu.memory_space<vmem>>, vector<1x32x32xf32>
    %18 = vector.shape_cast %17 : vector<1x32x32xf32> to vector<32x32xf32>
    %cst_16 = arith.constant dense<0.000000e+00> : vector<8x32xf32>
    %19 = tpu.matmul %16, %18, %cst_16 {dimension_numbers = #tpu.dot_dimension_numbers<[1], [0], [0], [1], [0, 0, 1, 1], [], []>} : vector<8x32xf32>, vector<32x32xf32>, vector<8x32xf32> -> vector<8x32xf32>
    %c1_17 = arith.constant 1 : index
    %c0_18 = arith.constant 0 : index
    %c0_19 = arith.constant 0 : index
    %20 = vector.load %arg5[%c1_17, %c0_18, %c0_19] : memref<3x1x32xf32, #tpu.memory_space<vmem>>, vector<1x1x32xf32>
    %21 = vector.shape_cast %20 : vector<1x1x32xf32> to vector<1x32xf32>
    %22 = vector.broadcast %21 : vector<1x32xf32> to vector<8x32xf32>
    %23 = arith.addf %19, %22 : vector<8x32xf32>
    %cst_20 = arith.constant 0.000000e+00 : f32
    %24 = vector.broadcast %cst_20 : f32 to vector<8x32xf32>
    %25 = arith.maximumf %23, %24 : vector<8x32xf32>
    %c2 = arith.constant 2 : index
    %c0_21 = arith.constant 0 : index
    %c0_22 = arith.constant 0 : index
    %26 = vector.load %arg4[%c2, %c0_21, %c0_22] : memref<3x32x32xf32, #tpu.memory_space<vmem>>, vector<1x32x32xf32>
    %27 = vector.shape_cast %26 : vector<1x32x32xf32> to vector<32x32xf32>
    %cst_23 = arith.constant dense<0.000000e+00> : vector<8x32xf32>
    %28 = tpu.matmul %25, %27, %cst_23 {dimension_numbers = #tpu.dot_dimension_numbers<[1], [0], [0], [1], [0, 0, 1, 1], [], []>} : vector<8x32xf32>, vector<32x32xf32>, vector<8x32xf32> -> vector<8x32xf32>
    %c2_24 = arith.constant 2 : index
    %c0_25 = arith.constant 0 : index
    %c0_26 = arith.constant 0 : index
    %29 = vector.load %arg5[%c2_24, %c0_25, %c0_26] : memref<3x1x32xf32, #tpu.memory_space<vmem>>, vector<1x1x32xf32>
    %30 = vector.shape_cast %29 : vector<1x1x32xf32> to vector<1x32xf32>
    %31 = vector.broadcast %30 : vector<1x32xf32> to vector<8x32xf32>
    %32 = arith.addf %28, %31 : vector<8x32xf32>
    %cst_27 = arith.constant 0.000000e+00 : f32
    %33 = vector.broadcast %cst_27 : f32 to vector<8x32xf32>
    %34 = arith.maximumf %32, %33 : vector<8x32xf32>
    %c0_28 = arith.constant 0 : index
    %c0_29 = arith.constant 0 : index
    %35 = vector.load %arg6[%c0_28, %c0_29] : memref<32x128xf32, #tpu.memory_space<vmem>>, vector<32x128xf32>
    %cst_30 = arith.constant dense<0.000000e+00> : vector<8x128xf32>
    %36 = tpu.matmul %34, %35, %cst_30 {dimension_numbers = #tpu.dot_dimension_numbers<[1], [0], [0], [1], [0, 0, 1, 1], [], []>} : vector<8x32xf32>, vector<32x128xf32>, vector<8x128xf32> -> vector<8x128xf32>
    %c0_31 = arith.constant 0 : index
    %c0_32 = arith.constant 0 : index
    %37 = vector.load %arg7[%c0_31, %c0_32] : memref<1x128xf32, #tpu.memory_space<vmem>>, vector<1x128xf32>
    %38 = vector.broadcast %37 : vector<1x128xf32> to vector<8x128xf32>
    %39 = arith.addf %36, %38 : vector<8x128xf32>
    %40 = math.tanh %39 : vector<8x128xf32>
    %c0_33 = arith.constant 0 : index
    %c0_34 = arith.constant 0 : index
    %41 = vector.load %arg8[%c0_33, %c0_34] : memref<8x128xf32, #tpu.memory_space<vmem>>, vector<8x128xf32>
    tpu.vector_store %arg8[%c0_33, %c0_34], %40 {strides = array<i32>} : memref<8x128xf32, #tpu.memory_space<vmem>>, vector<8x128xf32>,
    return
  }
  func.func @transform_0(%arg0: i32) -> (i32, i32) {
    %c0_i32 = arith.constant 0 : i32
    %c0_i32_0 = arith.constant 0 : i32
    return %arg0, %c0_i32 : i32, i32
  }
  func.func @transform_1(%arg0: i32) -> (i32, i32) {
    %c0_i32 = arith.constant 0 : i32
    %c0_i32_0 = arith.constant 0 : i32
    %c0_i32_1 = arith.constant 0 : i32
    return %c0_i32, %c0_i32_0 : i32, i32
  }
  func.func @transform_2(%arg0: i32) -> (i32, i32) {
    %c0_i32 = arith.constant 0 : i32
    %c0_i32_0 = arith.constant 0 : i32
    %c0_i32_1 = arith.constant 0 : i32
    return %c0_i32, %c0_i32_0 : i32, i32
  }
  func.func @transform_3(%arg0: i32) -> (i32, i32, i32) {
    %c0_i32 = arith.constant 0 : i32
    %c0_i32_0 = arith.constant 0 : i32
    %c0_i32_1 = arith.constant 0 : i32
    %c0_i32_2 = arith.constant 0 : i32
    return %c0_i32, %c0_i32_0, %c0_i32_1 : i32, i32, i32
  }
  func.func @transform_4(%arg0: i32) -> (i32, i32, i32) {
    %c0_i32 = arith.constant 0 : i32
    %c0_i32_0 = arith.constant 0 : i32
    %c0_i32_1 = arith.constant 0 : i32
    %c0_i32_2 = arith.constant 0 : i32
    return %c0_i32, %c0_i32_0, %c0_i32_1 : i32, i32, i32
  }
  func.func @transform_5(%arg0: i32) -> (i32, i32) {
    %c0_i32 = arith.constant 0 : i32
    %c0_i32_0 = arith.constant 0 : i32
    %c0_i32_1 = arith.constant 0 : i32
    return %c0_i32, %c0_i32_0 : i32, i32
  }
  func.func @transform_6(%arg0: i32) -> (i32, i32) {
    %c0_i32 = arith.constant 0 : i32
    %c0_i32_0 = arith.constant 0 : i32
    %c0_i32_1 = arith.constant 0 : i32
    return %c0_i32, %c0_i32_0 : i32, i32
  }
  func.func @transform_7(%arg0: i32) -> (i32, i32) {
    %c0_i32 = arith.constant 0 : i32
    %c0_i32_0 = arith.constant 0 : i32
    return %arg0, %c0_i32 : i32, i32
  }
}

</mosaic_0001>

<llo_original>
// kernel: tpu_custom_call.1
$region0: #{tpu_custom_call.1}
  #allocation0 [shape = 'u32[]', space=smem, size = 0x4, offset = 0x4, fixed_abs, tag = 'smem constant byte address 0x4 - core index']
  #allocation1 [shape = 'u32[144,128]{1,0:T(1,128)}', space=vmem, size = 0x12000, scoped, tag = 'internal scratch']
  %s0 = inlined_call_operand.hbm [shape: f32[8,16], index: 0, kind: input, shape index: {}]
  %s1 = inlined_call_operand.hbm [shape: f32[16,32], index: 1, kind: input, shape index: {}]
  %s2 = inlined_call_operand.vmem [shape: f32[1,32], index: 2, kind: input, shape index: {}]
  %s3 = inlined_call_operand.hbm [shape: f32[3,32,32], index: 3, kind: input, shape index: {}]
  %s4 = inlined_call_operand.vmem [shape: f32[3,1,32], index: 4, kind: input, shape index: {}]
  %s5 = inlined_call_operand.hbm [shape: f32[32,128], index: 5, kind: input, shape index: {}]
  %s6 = inlined_call_operand.vmem [shape: f32[1,128], index: 6, kind: input, shape index: {}]
  %s7 = inlined_call_operand.hbm [shape: f32[8,128], index: 7, kind: output, shape index: {}]
  %s8 = sld [smem:[#allocation0]]
  $region54: #{tpu_custom_call.1} parent=0
    _
  %s10 = ssub.s32 1, %s8
  %s11 = scalar_select 0, %s10, %s8
  $region1: #{tpu_custom_call.1} parent=0
    #allocation2 [shape = 'u8[4096]{0}', space=vmem, size = 0x1000, scoped, tag = 'input window, operand 0, single buffered']
    #allocation3 [shape = 's32[1]{0}', space=sflag, size = 0x4, scoped, tag = 'scoped memory for tpu_custom_call.1']
    #allocation4 [shape = 's32[1]{0}', space=sflag, size = 0x4, scoped, tag = 'scoped memory for tpu_custom_call.1']
    #allocation5 [shape = 'u8[8192]{0}', space=vmem, size = 0x2000, scoped, tag = 'input window, operand 1, single buffered']
    #allocation6 [shape = 's32[1]{0}', space=sflag, size = 0x4, scoped, tag = 'scoped memory for tpu_custom_call.1']
    #allocation7 [shape = 'u8[49152]{0}', space=vmem, size = 0xc000, scoped, tag = 'input window, operand 3, single buffered']
    #allocation8 [shape = 'u8[16384]{0}', space=vmem, size = 0x4000, scoped, tag = 'input window, operand 5, single buffered']
    #allocation9 [shape = 's32[1]{0}', space=sflag, size = 0x4, scoped, tag = 'scoped memory for tpu_custom_call.1']
    #allocation10 [shape = 'u8[4096]{0}', space=vmem, size = 0x1000, scoped, tag = 'output window, operand 0, single buffered']
    %12 = vsyncpa [#allocation3], 0
    %13 = vsyncpa [#allocation6], 0
    %14 = vsyncpa [#allocation9], 0
    %15 = vsyncpa [#allocation4], 0
    // Predicated region
    $region2: #{tpu_custom_call.1} parent=1 // pred_check
      _
    $region3: #{tpu_custom_call.1} parent=1 // pred_check_branch
      %17 = sbr.rel (0) target = $region5
    $region4: #{tpu_custom_call.1} parent=1 // pred_region
      %s19 = ssub.s32 128, 128
      %20 = vsyncadd [#allocation3], %s19
      %s22 = sshll.u32 [#allocation2], 4
      %s23 = int_to_ptr.vmem [resolvable:$true] %s22
      %25 = dma.hbm_to_vmem [thread:$0]  %s0, 128, %s23, [#allocation3]
    $region5: #{tpu_custom_call.1} parent=1 // pred_fallthru
      _
    // Predicated region
    $region6: #{tpu_custom_call.1} parent=1 // pred_check
      _
    $region7: #{tpu_custom_call.1} parent=1 // pred_check_branch
      %27 = sbr.rel (0) target = $region9
    $region8: #{tpu_custom_call.1} parent=1 // pred_region
      %s29 = ssub.s32 256, 256
      %30 = vsyncadd [#allocation6], %s29
      %s31 = sshll.u32 [#allocation5], 4
      %s32 = int_to_ptr.vmem [resolvable:$true] %s31
      %37 = dma.hbm_to_vmem [thread:$0]  %s1, 256, %s32, [#allocation6], 128, 128, 8
    $region9: #{tpu_custom_call.1} parent=1 // pred_fallthru
      _
    // Predicated region
    $region10: #{tpu_custom_call.1} parent=1 // pred_check
      _
    $region11: #{tpu_custom_call.1} parent=1 // pred_check_branch
      %39 = sbr.rel (0) target = $region13
    $region12: #{tpu_custom_call.1} parent=1 // pred_region
      _
    $region13: #{tpu_custom_call.1} parent=1 // pred_fallthru
      _
    // Predicated region
    $region14: #{tpu_custom_call.1} parent=1 // pred_check
      _
    $region15: #{tpu_custom_call.1} parent=1 // pred_check_branch
      %41 = sbr.rel (0) target = $region17
    $region16: #{tpu_custom_call.1} parent=1 // pred_region
      %s43 = ssub.s32 1536, 1536
      %44 = vsyncadd [#allocation6], %s43
      %s45 = sshll.u32 [#allocation7], 4
      %s46 = int_to_ptr.vmem [resolvable:$true] %s45
      %51 = dma.hbm_to_vmem [thread:$0]  %s3, 1536, %s46, [#allocation6], 128, 128, 8
    $region17: #{tpu_custom_call.1} parent=1 // pred_fallthru
      _
    // Predicated region
    $region18: #{tpu_custom_call.1} parent=1 // pred_check
      _
    $region19: #{tpu_custom_call.1} parent=1 // pred_check_branch
      %53 = sbr.rel (0) target = $region21
    $region20: #{tpu_custom_call.1} parent=1 // pred_region
      _
    $region21: #{tpu_custom_call.1} parent=1 // pred_fallthru
      _
    // Predicated region
    $region22: #{tpu_custom_call.1} parent=1 // pred_check
      _
    $region23: #{tpu_custom_call.1} parent=1 // pred_check_branch
      %55 = sbr.rel (0) target = $region25
    $region24: #{tpu_custom_call.1} parent=1 // pred_region
      %s57 = ssub.s32 512, 512
      %58 = vsyncadd [#allocation9], %s57
      %s59 = sshll.u32 [#allocation8], 4
      %s60 = int_to_ptr.vmem [resolvable:$true] %s59
      %65 = dma.hbm_to_vmem [thread:$0]  %s5, 512, %s60, [#allocation9], 128, 128, 8
    $region25: #{tpu_custom_call.1} parent=1 // pred_fallthru
      _
    // Predicated region
    $region26: #{tpu_custom_call.1} parent=1 // pred_check
      _
    $region27: #{tpu_custom_call.1} parent=1 // pred_check_branch
      %67 = sbr.rel (0) target = $region29
    $region28: #{tpu_custom_call.1} parent=1 // pred_region
      _
    $region29: #{tpu_custom_call.1} parent=1 // pred_fallthru
      _
    // Predicated region
    $region30: #{tpu_custom_call.1} parent=1 // pred_check
      _
    $region31: #{tpu_custom_call.1} parent=1 // pred_check_branch
      %69 = sbr.rel (0) target = $region33
    $region32: #{tpu_custom_call.1} parent=1 // pred_region
      %70 = dma.done [#allocation3], 128
    $region33: #{tpu_custom_call.1} parent=1 // pred_fallthru
      _
    // Predicated region
    $region34: #{tpu_custom_call.1} parent=1 // pred_check
      _
    $region35: #{tpu_custom_call.1} parent=1 // pred_check_branch
      %72 = sbr.rel (0) target = $region37
    $region36: #{tpu_custom_call.1} parent=1 // pred_region
      %73 = dma.done [#allocation6], 256
    $region37: #{tpu_custom_call.1} parent=1 // pred_fallthru
      _
    // Predicated region
    $region38: #{tpu_custom_call.1} parent=1 // pred_check
      _
    $region39: #{tpu_custom_call.1} parent=1 // pred_check_branch
      %75 = sbr.rel (0) target = $region41
    $region40: #{tpu_custom_call.1} parent=1 // pred_region
      %76 = dma.done [#allocation6], 1536
    $region41: #{tpu_custom_call.1} parent=1 // pred_fallthru
      _
    // Predicated region
    $region42: #{tpu_custom_call.1} parent=1 // pred_check
      _
    $region43: #{tpu_custom_call.1} parent=1 // pred_check_branch
      %78 = sbr.rel (0) target = $region45
    $region44: #{tpu_custom_call.1} parent=1 // pred_region
      %79 = dma.done [#allocation9], 512
    $region45: #{tpu_custom_call.1} parent=1 // pred_fallthru
      _
    %v80 = vld [vmem:[#allocation2] sm:$0xff]
    %v81 = vld [vmem:[#allocation5] sm:$0xff]
    %v82 = vld [vmem:[#allocation5 + $0x8] sm:$0xff]
    %v83 = vld [vmem:[%s2] sm:$0x1]
    %v85 = vlaneseq
    %v86 = vshrl.u32 %v85, 7
    %v87 = vsub.s32 0, %v86
    %v88 = vrot.slane %v83, %v87
    %vm90 = vcmask 130048
    %v92 = vsel %vm90, %v80, 0
    %94 = vmatprep.subr.mxu0 0.0
    %95 = vmatpush1.msra.mxu0 %v81
    %96 = vmatprep.subr.mxu0 0.0
    %97 = vmatpush1.msra.mxu0 %v82
    %98 = vmatprep.subr.mxu0 0.0
    %99 = vmatpush1.msra.mxu0 0.0
    %100 = vmatprep.subr.mxu0 0.0
    %101 = vmatpush1.msra.mxu0 0.0
    %102 = vmatprep.subr.mxu0 0.0
    %103 = vmatpush1.msra.mxu0 0.0
    %104 = vmatprep.subr.mxu0 0.0
    %105 = vmatpush1.msra.mxu0 0.0
    %106 = vmatprep.subr.mxu0 0.0
    %107 = vmatpush1.msra.mxu0 0.0
    %108 = vmatprep.subr.mxu0 0.0
    %109 = vmatpush1.msra.mxu0 0.0
    %110 = vmatprep.subr.mxu0 0.0
    %111 = vmatpush1.msra.mxu0 0.0
    %112 = vmatprep.subr.mxu0 0.0
    %113 = vmatpush1.msra.mxu0 0.0
    %114 = vmatprep.subr.mxu0 0.0
    %115 = vmatpush1.msra.mxu0 0.0
    %116 = vmatprep.subr.mxu0 0.0
    %117 = vmatpush1.msra.mxu0 0.0
    %118 = vmatprep.subr.mxu0 0.0
    %119 = vmatpush1.msra.mxu0 0.0
    %120 = vmatprep.subr.mxu0 0.0
    %121 = vmatpush1.msra.mxu0 0.0
    %122 = vmatprep.subr.mxu0 0.0
    %123 = vmatpush1.msra.mxu0 0.0
    %124 = vmatprep.subr.mxu0 0.0
    %125 = vmatpush1.msra.mxu0 0.0
    %126 = vmatprep.subr.mxu0 0.0
    %127 = vmatpush1.msra.mxu0 0.0
    %128 = vmatprep.subr.mxu0 0.0
    %129 = vmatpush1.msra.mxu0 0.0
    %130 = vmatprep.subr.mxu0 0.0
    %131 = vmatpush1.msra.mxu0 0.0
    %132 = vmatprep.subr.mxu0 0.0
    %133 = vmatpush1.msra.mxu0 0.0
    %134 = vmatprep.subr.mxu0 0.0
    %135 = vmatpush1.msra.mxu0 0.0
    %136 = vmatprep.subr.mxu0 0.0
    %137 = vmatpush1.msra.mxu0 0.0
    %138 = vmatprep.subr.mxu0 0.0
    %139 = vmatpush1.msra.mxu0 0.0
    %140 = vmatprep.subr.mxu0 0.0
    %141 = vmatpush1.msra.mxu0 0.0
    %142 = vmatprep.subr.mxu0 0.0
    %143 = vmatpush1.msra.mxu0 0.0
    %144 = vmatprep.subr.mxu0 0.0
    %145 = vmatpush1.msra.mxu0 0.0
    %146 = vmatprep.subr.mxu0 0.0
    %147 = vmatpush1.msra.mxu0 0.0
    %148 = vmatprep.subr.mxu0 0.0
    %149 = vmatpush1.msra.mxu0 0.0
    %150 = vmatprep.subr.mxu0 0.0
    %151 = vmatpush1.msra.mxu0 0.0
    %152 = vmatprep.subr.mxu0 0.0
    %153 = vmatpush1.msra.mxu0 0.0
    %154 = vmatprep.subr.mxu0 0.0
    %155 = vmatpush1.msra.mxu0 0.0
    %156 = vmatprep.subr.mxu0 0.0
    %157 = vmatpush1.msra.mxu0 0.0
    %158 = vmatprep.mubr.f32.mxu0 0.0
    %159 = vmatmul.mubr.f32.gmra.mrb[0].mxu0 %v92
    %v160 = vpop.f32.mrb[0].mxu0
    %v161 = vadd.f32 %v88, %v160
    %v162 = vpop.f32.mrb[0].mxu0
    %163 = vdwg.mxu0
    %v164 = vmax.f32 %v161, 0.0
    %v165 = vld [vmem:[#allocation7] sm:$0xff]
    %v166 = vld [vmem:[#allocation7 + $0x8] sm:$0xff]
    %v167 = vld [vmem:[#allocation7 + $0x10] sm:$0xff]
    %v168 = vld [vmem:[#allocation7 + $0x18] sm:$0xff]
    %v169 = vld [vmem:[%s4] sm:$0x1]
    %v171 = vlaneseq
    %v172 = vshrl.u32 %v171, 7
    %v173 = vsub.s32 0, %v172
    %v174 = vrot.slane %v169, %v173
    %vm176 = vcmask 261120
    %v178 = vsel %vm176, %v164, 0
    %180 = vmatprep.subr.mxu0 0.0
    %181 = vmatpush1.msra.mxu0 %v165
    %182 = vmatprep.subr.mxu0 0.0
    %183 = vmatpush1.msra.mxu0 %v166
    %184 = vmatprep.subr.mxu0 0.0
    %185 = vmatpush1.msra.mxu0 %v167
    %186 = vmatprep.subr.mxu0 0.0
    %187 = vmatpush1.msra.mxu0 %v168
    %188 = vmatprep.subr.mxu0 0.0
    %189 = vmatpush1.msra.mxu0 0.0
    %190 = vmatprep.subr.mxu0 0.0
    %191 = vmatpush1.msra.mxu0 0.0
    %192 = vmatprep.subr.mxu0 0.0
    %193 = vmatpush1.msra.mxu0 0.0
    %194 = vmatprep.subr.mxu0 0.0
    %195 = vmatpush1.msra.mxu0 0.0
    %196 = vmatprep.subr.mxu0 0.0
    %197 = vmatpush1.msra.mxu0 0.0
    %198 = vmatprep.subr.mxu0 0.0
    %199 = vmatpush1.msra.mxu0 0.0
    %200 = vmatprep.subr.mxu0 0.0
    %201 = vmatpush1.msra.mxu0 0.0
    %202 = vmatprep.subr.mxu0 0.0
    %203 = vmatpush1.msra.mxu0 0.0
    %204 = vmatprep.subr.mxu0 0.0
    %205 = vmatpush1.msra.mxu0 0.0
    %206 = vmatprep.subr.mxu0 0.0
    %207 = vmatpush1.msra.mxu0 0.0
    %208 = vmatprep.subr.mxu0 0.0
    %209 = vmatpush1.msra.mxu0 0.0
    %210 = vmatprep.subr.mxu0 0.0
    %211 = vmatpush1.msra.mxu0 0.0
    %212 = vmatprep.subr.mxu0 0.0
    %213 = vmatpush1.msra.mxu0 0.0
    %214 = vmatprep.subr.mxu0 0.0
    %215 = vmatpush1.msra.mxu0 0.0
    %216 = vmatprep.subr.mxu0 0.0
    %217 = vmatpush1.msra.mxu0 0.0
    %218 = vmatprep.subr.mxu0 0.0
    %219 = vmatpush1.msra.mxu0 0.0
    %220 = vmatprep.subr.mxu0 0.0
    %221 = vmatpush1.msra.mxu0 0.0
    %222 = vmatprep.subr.mxu0 0.0
    %223 = vmatpush1.msra.mxu0 0.0
    %224 = vmatprep.subr.mxu0 0.0
    %225 = vmatpush1.msra.mxu0 0.0
    %226 = vmatprep.subr.mxu0 0.0
    %227 = vmatpush1.msra.mxu0 0.0
    %228 = vmatprep.subr.mxu0 0.0
    %229 = vmatpush1.msra.mxu0 0.0
    %230 = vmatprep.subr.mxu0 0.0
    %231 = vmatpush1.msra.mxu0 0.0
    %232 = vmatprep.subr.mxu0 0.0
    %233 = vmatpush1.msra.mxu0 0.0
    %234 = vmatprep.subr.mxu0 0.0
    %235 = vmatpush1.msra.mxu0 0.0
    %236 = vmatprep.subr.mxu0 0.0
    %237 = vmatpush1.msra.mxu0 0.0
    %238 = vmatprep.subr.mxu0 0.0
    %239 = vmatpush1.msra.mxu0 0.0
    %240 = vmatprep.subr.mxu0 0.0
    %241 = vmatpush1.msra.mxu0 0.0
    %242 = vmatprep.subr.mxu0 0.0
    %243 = vmatpush1.msra.mxu0 0.0
    %244 = vmatprep.mubr.f32.mxu0 0.0
    %245 = vmatmul.mubr.f32.gmra.mrb[0].mxu0 %v178
    %v246 = vpop.f32.mrb[0].mxu0
    %v247 = vadd.f32 %v174, %v246
    %v248 = vpop.f32.mrb[0].mxu0
    %249 = vdwg.mxu0
    %v250 = vmax.f32 %v247, 0.0
    %s251 = scalar_lea.vmem [#allocation7], 32
    %v252 = vld [vmem:[%s251] sm:$0xff]
    %v253 = vld [vmem:[%s251 + $0x8] sm:$0xff]
    %v254 = vld [vmem:[%s251 + $0x10] sm:$0xff]
    %v255 = vld [vmem:[%s251 + $0x18] sm:$0xff]
    %s256 = scalar_lea.vmem %s4, 1
    %v257 = vld [vmem:[%s256] sm:$0x1]
    %v259 = vlaneseq
    %v260 = vshrl.u32 %v259, 7
    %v261 = vsub.s32 0, %v260
    %v262 = vrot.slane %v257, %v261
    %v265 = vsel %vm176, %v250, 0
    %267 = vmatprep.subr.mxu0 0.0
    %268 = vmatpush1.msra.mxu0 %v252
    %269 = vmatprep.subr.mxu0 0.0
    %270 = vmatpush1.msra.mxu0 %v253
    %271 = vmatprep.subr.mxu0 0.0
    %272 = vmatpush1.msra.mxu0 %v254
    %273 = vmatprep.subr.mxu0 0.0
    %274 = vmatpush1.msra.mxu0 %v255
    %275 = vmatprep.subr.mxu0 0.0
    %276 = vmatpush1.msra.mxu0 0.0
    %277 = vmatprep.subr.mxu0 0.0
    %278 = vmatpush1.msra.mxu0 0.0
    %279 = vmatprep.subr.mxu0 0.0
    %280 = vmatpush1.msra.mxu0 0.0
    %281 = vmatprep.subr.mxu0 0.0
    %282 = vmatpush1.msra.mxu0 0.0
    %283 = vmatprep.subr.mxu0 0.0
    %284 = vmatpush1.msra.mxu0 0.0
    %285 = vmatprep.subr.mxu0 0.0
    %286 = vmatpush1.msra.mxu0 0.0
    %287 = vmatprep.subr.mxu0 0.0
    %288 = vmatpush1.msra.mxu0 0.0
    %289 = vmatprep.subr.mxu0 0.0
    %290 = vmatpush1.msra.mxu0 0.0
    %291 = vmatprep.subr.mxu0 0.0
    %292 = vmatpush1.msra.mxu0 0.0
    %293 = vmatprep.subr.mxu0 0.0
    %294 = vmatpush1.msra.mxu0 0.0
    %295 = vmatprep.subr.mxu0 0.0
    %296 = vmatpush1.msra.mxu0 0.0
    %297 = vmatprep.subr.mxu0 0.0
    %298 = vmatpush1.msra.mxu0 0.0
    %299 = vmatprep.subr.mxu0 0.0
    %300 = vmatpush1.msra.mxu0 0.0
    %301 = vmatprep.subr.mxu0 0.0
    %302 = vmatpush1.msra.mxu0 0.0
    %303 = vmatprep.subr.mxu0 0.0
    %304 = vmatpush1.msra.mxu0 0.0
    %305 = vmatprep.subr.mxu0 0.0
    %306 = vmatpush1.msra.mxu0 0.0
    %307 = vmatprep.subr.mxu0 0.0
    %308 = vmatpush1.msra.mxu0 0.0
    %309 = vmatprep.subr.mxu0 0.0
    %310 = vmatpush1.msra.mxu0 0.0
    %311 = vmatprep.subr.mxu0 0.0
    %312 = vmatpush1.msra.mxu0 0.0
    %313 = vmatprep.subr.mxu0 0.0
    %314 = vmatpush1.msra.mxu0 0.0
    %315 = vmatprep.subr.mxu0 0.0
    %316 = vmatpush1.msra.mxu0 0.0
    %317 = vmatprep.subr.mxu0 0.0
    %318 = vmatpush1.msra.mxu0 0.0
    %319 = vmatprep.subr.mxu0 0.0
    %320 = vmatpush1.msra.mxu0 0.0
    %321 = vmatprep.subr.mxu0 0.0
    %322 = vmatpush1.msra.mxu0 0.0
    %323 = vmatprep.subr.mxu0 0.0
    %324 = vmatpush1.msra.mxu0 0.0
    %325 = vmatprep.subr.mxu0 0.0
    %326 = vmatpush1.msra.mxu0 0.0
    %327 = vmatprep.subr.mxu0 0.0
    %328 = vmatpush1.msra.mxu0 0.0
    %329 = vmatprep.subr.mxu0 0.0
    %330 = vmatpush1.msra.mxu0 0.0
    %331 = vmatprep.mubr.f32.mxu0 0.0
    %332 = vmatmul.mubr.f32.gmra.mrb[0].mxu0 %v265
    %v333 = vpop.f32.mrb[0].mxu0
    %v334 = vadd.f32 %v262, %v333
    %v335 = vpop.f32.mrb[0].mxu0
    %336 = vdwg.mxu0
    %v337 = vmax.f32 %v334, 0.0
    %s338 = scalar_lea.vmem [#allocation7], 64
    %v339 = vld [vmem:[%s338] sm:$0xff]
    %v340 = vld [vmem:[%s338 + $0x8] sm:$0xff]
    %v341 = vld [vmem:[%s338 + $0x10] sm:$0xff]
    %v342 = vld [vmem:[%s338 + $0x18] sm:$0xff]
    %s343 = scalar_lea.vmem %s4, 2
    %v344 = vld [vmem:[%s343] sm:$0x1]
    %v346 = vlaneseq
    %v347 = vshrl.u32 %v346, 7
    %v348 = vsub.s32 0, %v347
    %v349 = vrot.slane %v344, %v348
    %v352 = vsel %vm176, %v337, 0
    %354 = vmatprep.subr.mxu0 0.0
    %355 = vmatpush1.msra.mxu0 %v339
    %356 = vmatprep.subr.mxu0 0.0
    %357 = vmatpush1.msra.mxu0 %v340
    %358 = vmatprep.subr.mxu0 0.0
    %359 = vmatpush1.msra.mxu0 %v341
    %360 = vmatprep.subr.mxu0 0.0
    %361 = vmatpush1.msra.mxu0 %v342
    %362 = vmatprep.subr.mxu0 0.0
    %363 = vmatpush1.msra.mxu0 0.0
    %364 = vmatprep.subr.mxu0 0.0
    %365 = vmatpush1.msra.mxu0 0.0
    %366 = vmatprep.subr.mxu0 0.0
    %367 = vmatpush1.msra.mxu0 0.0
    %368 = vmatprep.subr.mxu0 0.0
    %369 = vmatpush1.msra.mxu0 0.0
    %370 = vmatprep.subr.mxu0 0.0
    %371 = vmatpush1.msra.mxu0 0.0
    %372 = vmatprep.subr.mxu0 0.0
    %373 = vmatpush1.msra.mxu0 0.0
    %374 = vmatprep.subr.mxu0 0.0
    %375 = vmatpush1.msra.mxu0 0.0
    %376 = vmatprep.subr.mxu0 0.0
    %377 = vmatpush1.msra.mxu0 0.0
    %378 = vmatprep.subr.mxu0 0.0
    %379 = vmatpush1.msra.mxu0 0.0
    %380 = vmatprep.subr.mxu0 0.0
    %381 = vmatpush1.msra.mxu0 0.0
    %382 = vmatprep.subr.mxu0 0.0
    %383 = vmatpush1.msra.mxu0 0.0
    %384 = vmatprep.subr.mxu0 0.0
    %385 = vmatpush1.msra.mxu0 0.0
    %386 = vmatprep.subr.mxu0 0.0
    %387 = vmatpush1.msra.mxu0 0.0
    %388 = vmatprep.subr.mxu0 0.0
    %389 = vmatpush1.msra.mxu0 0.0
    %390 = vmatprep.subr.mxu0 0.0
    %391 = vmatpush1.msra.mxu0 0.0
    %392 = vmatprep.subr.mxu0 0.0
    %393 = vmatpush1.msra.mxu0 0.0
    %394 = vmatprep.subr.mxu0 0.0
    %395 = vmatpush1.msra.mxu0 0.0
    %396 = vmatprep.subr.mxu0 0.0
    %397 = vmatpush1.msra.mxu0 0.0
    %398 = vmatprep.subr.mxu0 0.0
    %399 = vmatpush1.msra.mxu0 0.0
    %400 = vmatprep.subr.mxu0 0.0
    %401 = vmatpush1.msra.mxu0 0.0
    %402 = vmatprep.subr.mxu0 0.0
    %403 = vmatpush1.msra.mxu0 0.0
    %404 = vmatprep.subr.mxu0 0.0
    %405 = vmatpush1.msra.mxu0 0.0
    %406 = vmatprep.subr.mxu0 0.0
    %407 = vmatpush1.msra.mxu0 0.0
    %408 = vmatprep.subr.mxu0 0.0
    %409 = vmatpush1.msra.mxu0 0.0
    %410 = vmatprep.subr.mxu0 0.0
    %411 = vmatpush1.msra.mxu0 0.0
    %412 = vmatprep.subr.mxu0 0.0
    %413 = vmatpush1.msra.mxu0 0.0
    %414 = vmatprep.subr.mxu0 0.0
    %415 = vmatpush1.msra.mxu0 0.0
    %416 = vmatprep.subr.mxu0 0.0
    %417 = vmatpush1.msra.mxu0 0.0
    %418 = vmatprep.mubr.f32.mxu0 0.0
    %419 = vmatmul.mubr.f32.gmra.mrb[0].mxu0 %v352
    %v420 = vpop.f32.mrb[0].mxu0
    %v421 = vadd.f32 %v349, %v420
    %v422 = vpop.f32.mrb[0].mxu0
    %423 = vdwg.mxu0
    %v424 = vmax.f32 %v421, 0.0
    %v425 = vld [vmem:[#allocation8] sm:$0xff]
    %v426 = vld [vmem:[#allocation8 + $0x8] sm:$0xff]
    %v427 = vld [vmem:[#allocation8 + $0x10] sm:$0xff]
    %v428 = vld [vmem:[#allocation8 + $0x18] sm:$0xff]
    %v429 = vld [vmem:[%s6] sm:$0x1]
    %v431 = vlaneseq
    %v432 = vshrl.u32 %v431, 7
    %v433 = vsub.s32 0, %v432
    %v434 = vrot.slane %v429, %v433
    %v437 = vsel %vm176, %v424, 0
    %439 = vmatprep.subr.mxu0 0.0
    %440 = vmatpush1.msra.mxu0 %v425
    %441 = vmatprep.subr.mxu0 0.0
    %442 = vmatpush1.msra.mxu0 %v426
    %443 = vmatprep.subr.mxu0 0.0
    %444 = vmatpush1.msra.mxu0 %v427
    %445 = vmatprep.subr.mxu0 0.0
    %446 = vmatpush1.msra.mxu0 %v428
    %447 = vmatprep.subr.mxu0 0.0
    %448 = vmatpush1.msra.mxu0 0.0
    %449 = vmatprep.subr.mxu0 0.0
    %450 = vmatpush1.msra.mxu0 0.0
    %451 = vmatprep.subr.mxu0 0.0
    %452 = vmatpush1.msra.mxu0 0.0
    %453 = vmatprep.subr.mxu0 0.0
    %454 = vmatpush1.msra.mxu0 0.0
    %455 = vmatprep.subr.mxu0 0.0
    %456 = vmatpush1.msra.mxu0 0.0
    %457 = vmatprep.subr.mxu0 0.0
    %458 = vmatpush1.msra.mxu0 0.0
    %459 = vmatprep.subr.mxu0 0.0
    %460 = vmatpush1.msra.mxu0 0.0
    %461 = vmatprep.subr.mxu0 0.0
    %462 = vmatpush1.msra.mxu0 0.0
    %463 = vmatprep.subr.mxu0 0.0
    %464 = vmatpush1.msra.mxu0 0.0
    %465 = vmatprep.subr.mxu0 0.0
    %466 = vmatpush1.msra.mxu0 0.0
    %467 = vmatprep.subr.mxu0 0.0
    %468 = vmatpush1.msra.mxu0 0.0
    %469 = vmatprep.subr.mxu0 0.0
    %470 = vmatpush1.msra.mxu0 0.0
    %471 = vmatprep.subr.mxu0 0.0
    %472 = vmatpush1.msra.mxu0 0.0
    %473 = vmatprep.subr.mxu0 0.0
    %474 = vmatpush1.msra.mxu0 0.0
    %475 = vmatprep.subr.mxu0 0.0
    %476 = vmatpush1.msra.mxu0 0.0
    %477 = vmatprep.subr.mxu0 0.0
    %478 = vmatpush1.msra.mxu0 0.0
    %479 = vmatprep.subr.mxu0 0.0
    %480 = vmatpush1.msra.mxu0 0.0
    %481 = vmatprep.subr.mxu0 0.0
    %482 = vmatpush1.msra.mxu0 0.0
    %483 = vmatprep.subr.mxu0 0.0
    %484 = vmatpush1.msra.mxu0 0.0
    %485 = vmatprep.subr.mxu0 0.0
    %486 = vmatpush1.msra.mxu0 0.0
    %487 = vmatprep.subr.mxu0 0.0
    %488 = vmatpush1.msra.mxu0 0.0
    %489 = vmatprep.subr.mxu0 0.0
    %490 = vmatpush1.msra.mxu0 0.0
    %491 = vmatprep.subr.mxu0 0.0
    %492 = vmatpush1.msra.mxu0 0.0
    %493 = vmatprep.subr.mxu0 0.0
    %494 = vmatpush1.msra.mxu0 0.0
    %495 = vmatprep.subr.mxu0 0.0
    %496 = vmatpush1.msra.mxu0 0.0
    %497 = vmatprep.subr.mxu0 0.0
    %498 = vmatpush1.msra.mxu0 0.0
    %499 = vmatprep.subr.mxu0 0.0
    %500 = vmatpush1.msra.mxu0 0.0
    %501 = vmatprep.subr.mxu0 0.0
    %502 = vmatpush1.msra.mxu0 0.0
    %503 = vmatprep.mubr.f32.mxu0 0.0
    %504 = vmatmul.mubr.f32.gmra.mrb[0].mxu0 %v437
    %v505 = vpop.f32.mrb[0].mxu0
    %v506 = vadd.f32 %v434, %v505
    %v507 = vpop.f32.mrb[0].mxu0
    %508 = vdwg.mxu0
    %v509 = vtanh.pop %v506
    %510 = vst [vmem:[#allocation10] sm:$0xff] %v509
    // Predicated region
    $region46: #{tpu_custom_call.1} parent=1 // pred_check
      _
    $region47: #{tpu_custom_call.1} parent=1 // pred_check_branch
      %512 = sbr.rel (0) target = $region49
    $region48: #{tpu_custom_call.1} parent=1 // pred_region
      %s514 = ssub.s32 128, 128
      %515 = vsyncadd [#allocation4], %s514
      %s517 = sshll.u32 [#allocation10], 4
      %s518 = int_to_ptr.vmem [resolvable:$true] %s517
      %520 = dma.vmem_to_hbm [thread:$0]  %s518, 128, %s7, [#allocation4]
    $region49: #{tpu_custom_call.1} parent=1 // pred_fallthru
      _
    // Predicated region
    $region50: #{tpu_custom_call.1} parent=1 // pred_check
      _
    $region51: #{tpu_custom_call.1} parent=1 // pred_check_branch
      %522 = sbr.rel (0) target = $region53
    $region52: #{tpu_custom_call.1} parent=1 // pred_region
      %523 = dma.done [#allocation4], 128
    $region53: #{tpu_custom_call.1} parent=1 // pred_fallthru
      _
    %524 = vsyncpa [#allocation3], 1
    %525 = vsyncpa [#allocation6], 1
    %526 = vsyncpa [#allocation9], 1
    %527 = vsyncpa [#allocation4], 1

</llo_original>
